<compile_context>
chip_gen: v7x
topology: tpu7x:2x2x1
jax: 0.10.0
libtpu: 0.0.40
codegen_flags: <defaults>
</compile_context>

<pallas_src>
import functools

import numpy as np
import jax
import jax.numpy as jnp
from jax.experimental import pallas as pl
from jax.experimental.pallas import tpu as pltpu

# ------------------------- configuration (small shapes) -------------------------
PATCH_SIZE = (8, 8)        # (patch_h, patch_w), downscaled from the default 192x192
OVERLAP = 0.5              # -> stride 4
MIN_OBJECT_SIZE = 2        # downscaled from the default 20
NUM_ANCHORS = 4            # anchors per patch for the synthetic base detector head
SCORE_THRESHOLD = 0.3
NMS_THRESHOLD = 0.5


def _round_up(x, m):
    return ((x + m - 1) // m) * m


def _base_anchors_coord_grouped():
    """Fixed anchors inside a patch, coordinate-grouped [x1*A | y1*A | x2*A | y2*A]."""
    ph, pw = PATCH_SIZE
    centers = [(pw * 0.25, ph * 0.25), (pw * 0.25, ph * 0.75),
               (pw * 0.75, ph * 0.25), (pw * 0.75, ph * 0.75)]
    half = 2.0
    x1 = [c[0] - half for c in centers]
    y1 = [c[1] - half for c in centers]
    x2 = [c[0] + half for c in centers]
    y2 = [c[1] + half for c in centers]
    return np.asarray(x1 + y1 + x2 + y2, dtype=np.float32)


_BASE_ANCHORS = _base_anchors_coord_grouped()   # hoisted: static for a fixed config


# ------------------------------- Pallas kernel ----------------------------------
def _detector_kernel(feats_ref, w_ref, addend_ref, out_ref, *,
                     num_anchors, min_size_sq, score_threshold, num_valid_rows):
    """One MXU matmul (bf16 in, f32 out) + fused box decode / filtering.

    feats_ref : (tm, F_pad)  bf16   flattened patch features (+ ones column for bias)
    w_ref     : (F_pad, 128) bf16   detector weights (+ bias row); VMEM-resident
    addend_ref: (tm, 4A)     f32    base anchors + per-patch (x_off, y_off), coord-grouped
    out_ref   : (tm, 128)    f32    [boxes(4A) | scores(A) | classes(A) | valid(A) | 0...]
    """
    A = num_anchors
    tm, lanes = out_ref.shape

    # hot path: bf16 inputs, f32 result on the MXU (bias folded into the matmul)
    raw = jnp.dot(feats_ref[...], w_ref[...], preferred_element_type=jnp.float32)

    deltas = raw[:, :4 * A]
    score_logits = raw[:, 4 * A:5 * A]
    class_logits = raw[:, 5 * A:6 * A]

    # decode in patch coords and shift into image coords in one add
    # (addend = base_anchors + [x_off|y_off|x_off|y_off] per row, precomputed exactly)
    boxes = jnp.tanh(deltas) * 2.0 + addend_ref[...]
    x1 = boxes[:, 0 * A:1 * A]
    y1 = boxes[:, 1 * A:2 * A]
    x2 = boxes[:, 2 * A:3 * A]
    y2 = boxes[:, 3 * A:4 * A]
    areas = (x2 - x1) * (y2 - y1)            # same (area) semantics as the reference
    scores = jax.nn.sigmoid(score_logits)
    # TODO(synk): single per-anchor class logit -> sign test; use argmax for a real
    # multi-class head.
    classes = (class_logits > 0.0).astype(jnp.float32)

    # mask padded rows (rows >= M would otherwise see raw == 0 and could leak valid=1)
    row = (jax.lax.broadcasted_iota(jnp.int32, (tm, A), 0)
           + pl.program_id(0) * tm)
    in_range = row < num_valid_rows
    valid = jnp.where((areas >= min_size_sq)
                      & (scores >= score_threshold)
                      & in_range, 1.0, 0.0)

    # single unmasked dense (tm, 128) store
    pad = jnp.zeros((tm, lanes - 7 * A), jnp.float32)
    out_ref[...] = jnp.concatenate([boxes, scores, classes, valid, pad], axis=-1)


# --------------------------- jitted device-side path -----------------------------
@jax.jit
def _device_forward(x, w, b):
    """Patch extraction (one XLA op, NHWC so no (M,F) transpose is materialized) +
    Pallas detector head.  Returns per-anchor boxes (M, A, 4), scores (M, A),
    classes (M, A), valid flags (M, A)."""
    A = NUM_ANCHORS
    ph, pw = PATCH_SIZE
    sh = int(ph * (1 - OVERLAP))
    sw = int(pw * (1 - OVERLAP))
    Bx, C, H, W = x.shape

    # im2col via a single XLA op (no Python per-patch loop).  NHWC dimension numbers
    # make the patch-feature axis the minor axis, so the (B, ny, nx, F) -> (M, F)
    # reshape below is free (contiguous) -- no big materialized transpose.
    # Feature ordering is (c, dy, dx), identical to x[b, :, y:y+ph, x:x+pw].reshape(-1).
    # bf16 halves im2col HBM traffic; values are copied exactly (identity kernel).
    x_nhwc = jnp.transpose(x, (0, 2, 3, 1)).astype(jnp.bfloat16)
    patches = jax.lax.conv_general_dilated_patches(
        x_nhwc, filter_shape=(ph, pw), window_strides=(sh, sw), padding='VALID',
        dimension_numbers=('NHWC', 'HWIO', 'NHWC'))
    _, ny, nx, F_feat = patches.shape
    M = Bx * ny * nx
    P = ny * nx
    O = 6 * A
    feats = patches.reshape(M, F_feat)

    # --- tiling: collapse to a single grid step for small M, 256-row tiles otherwise ---
    if M <= 512:
        M_pad = _round_up(M, 16)            # bf16-native sublane multiple
        tm = M_pad                          # grid = (1,) -> zero per-step overhead
    else:
        tm = 256
        M_pad = _round_up(M, tm)
    # +1 feature column carries the bias (ones column trick)
    F_pad = _round_up(F_feat + 1, 128)
    O_pad = 128                             # only 6A=24 lanes real; never pad to 256
    # TODO(synk): for very large F (real 192x192 patches) the full-F feats block will
    # not fit VMEM; re-introduce a K-tiled grid (or emit_pipeline) and re-budget for
    # v7x's 64 MiB VMEM in that regime.

    feats_p = jnp.zeros((M_pad, F_pad), jnp.bfloat16)
    feats_p = feats_p.at[:M, :F_feat].set(feats)
    feats_p = feats_p.at[:M, F_feat].set(jnp.bfloat16(1.0))       # bias column
    w_p = jnp.zeros((F_pad, O_pad), jnp.bfloat16)
    w_p = w_p.at[:F_feat, :O].set(w.astype(jnp.bfloat16))
    w_p = w_p.at[F_feat, :O].set(b.reshape(-1).astype(jnp.bfloat16))  # bias row

    # exact integer offsets (x_off, y_off) per global row, coord-grouped; plus anchors
    rows = jnp.arange(M_pad, dtype=jnp.int32)
    patch = rows % P
    yi = patch // nx
    xi = patch % nx
    x_off = (xi * sw).astype(jnp.float32)[:, None]
    y_off = (yi * sh).astype(jnp.float32)[:, None]
    offs = jnp.concatenate([jnp.repeat(x_off, A, axis=1),
                            jnp.repeat(y_off, A, axis=1),
                            jnp.repeat(x_off, A, axis=1),
                            jnp.repeat(y_off, A, axis=1)], axis=1)     # (M_pad, 4A)
    addend = jnp.asarray(_BASE_ANCHORS)[None, :] + offs

    kernel = functools.partial(
        _detector_kernel,
        num_anchors=A,
        min_size_sq=float(MIN_OBJECT_SIZE ** 2),
        score_threshold=float(SCORE_THRESHOLD),
        num_valid_rows=M)

    grid = (M_pad // tm,)
    slab = pl.pallas_call(
        kernel,
        out_shape=jax.ShapeDtypeStruct((M_pad, O_pad), jnp.float32),
        grid_spec=pltpu.PrefetchScalarGridSpec(
            num_scalar_prefetch=0,
            grid=grid,
            in_specs=[
                pl.BlockSpec((tm, F_pad), lambda i: (i, 0)),     # patch features
                pl.BlockSpec((F_pad, O_pad), lambda i: (0, 0)),  # weights: VMEM-resident
                pl.BlockSpec((tm, 4 * A), lambda i: (i, 0)),     # anchors + offsets
            ],
            out_specs=pl.BlockSpec((tm, O_pad), lambda i: (i, 0)),
        ),
        compiler_params=pltpu.CompilerParams(
            dimension_semantics=("parallel",)),
        cost_estimate=pl.CostEstimate(
            flops=2 * M_pad * F_pad * O_pad,
            transcendentals=M_pad * 5 * A,
            bytes_accessed=(M_pad * F_pad * 2 + F_pad * O_pad * 2
                            + M_pad * 4 * A * 4 + M_pad * O_pad * 4)),
    )(feats_p, w_p, addend)

    # unpack the lane-dense slab (still inside jit; padded rows/cols sliced away)
    slab = slab[:M]
    boxes_cg = slab[:, :4 * A]
    boxes = jnp.stack([boxes_cg[:, 0:A], boxes_cg[:, A:2 * A],
                       boxes_cg[:, 2 * A:3 * A], boxes_cg[:, 3 * A:4 * A]], axis=-1)
    scores = slab[:, 4 * A:5 * A]
    classes = slab[:, 5 * A:6 * A]
    valid = slab[:, 6 * A:7 * A]
    return boxes, scores, classes, valid


# --------------------------- glue: merge + NMS (host) -----------------------------
# TODO(synk): cv2.dnn.NMSBoxes expects (x, y, w, h) boxes and returns a dynamic-length
# index list; implemented here as standard greedy NMS on (x1, y1, x2, y2) on host.
def _greedy_nms(boxes, scores, iou_thresh):
    order = np.argsort(-scores)
    keep = []
    while order.size > 0:
        i = order[0]
        keep.append(i)
        if order.size == 1:
            break
        rest = order[1:]
        xx1 = np.maximum(boxes[i, 0], boxes[rest, 0])
        yy1 = np.maximum(boxes[i, 1], boxes[rest, 1])
        xx2 = np.minimum(boxes[i, 2], boxes[rest, 2])
        yy2 = np.minimum(boxes[i, 3], boxes[rest, 3])
        inter = np.maximum(0.0, xx2 - xx1) * np.maximum(0.0, yy2 - yy1)
        area_i = (boxes[i, 2] - boxes[i, 0]) * (boxes[i, 3] - boxes[i, 1])
        area_r = (boxes[rest, 2] - boxes[rest, 0]) * (boxes[rest, 3] - boxes[rest, 1])
        iou = inter / np.maximum(area_i + area_r - inter, 1e-9)
        order = rest[iou <= iou_thresh]
    return np.asarray(keep, dtype=np.int64)


def merge_predictions(boxes, scores, classes, valid, batch_size, patches_per_image):
    """Per-image merge + NMS (score threshold already folded into `valid` in-kernel)."""
    boxes = np.asarray(boxes)
    scores = np.asarray(scores)
    classes = np.asarray(classes)
    valid = np.asarray(valid) > 0.5
    results = []
    for bi in range(batch_size):
        sl = slice(bi * patches_per_image, (bi + 1) * patches_per_image)
        b = boxes[sl].reshape(-1, 4)
        s = scores[sl].reshape(-1)
        c = classes[sl].reshape(-1)
        v = valid[sl].reshape(-1)
        if not np.any(v):
            results.append({'boxes': np.array([]), 'scores': np.array([]),
                            'classes': np.array([])})
            continue
        b, s, c = b[v], s[v], c[v]
        keep = _greedy_nms(b, s, NMS_THRESHOLD)
        results.append({'boxes': b[keep], 'scores': s[keep], 'classes': c[keep]})
    return results


def parallel_patch_detector_forward(x, w, b):
    ph, pw = PATCH_SIZE
    sh = int(ph * (1 - OVERLAP))
    sw = int(pw * (1 - OVERLAP))
    _, _, H, W = x.shape
    ny = (H - ph) // sh + 1
    nx = (W - pw) // sw + 1
    outs = _device_forward(x, w, b)
    jax.block_until_ready(outs)
    boxes, scores, classes, valid = outs
    return merge_predictions(boxes, scores, classes, valid, x.shape[0], ny * nx)


# --------------------------- pure-numpy reference (sanity) ------------------------
def _reference_boxes_scores(x, w, b):
    ph, pw = PATCH_SIZE
    sh = int(ph * (1 - OVERLAP))
    sw = int(pw * (1 - OVERLAP))
    A = NUM_ANCHORS
    Bx, C, H, W = x.shape
    feats, offs = [], []
    for bi in range(Bx):
        for y in range(0, H - ph + 1, sh):
            for xo in range(0, W - pw + 1, sw):
                feats.append(x[bi, :, y:y + ph, xo:xo + pw].reshape(-1))
                offs.append((xo, y))
    feats = np.stack(feats, axis=0)
    raw = feats @ w + b
    boxes_cg = _BASE_ANCHORS[None, :] + np.tanh(raw[:, :4 * A]) * 2.0
    offm = np.zeros_like(boxes_cg)
    for i, (xo, yo) in enumerate(offs):
        offm[i, 0:A] = xo
        offm[i, A:2 * A] = yo
        offm[i, 2 * A:3 * A] = xo
        offm[i, 3 * A:4 * A] = yo
    boxes_cg = boxes_cg + offm
    boxes = np.stack([boxes_cg[:, 0:A], boxes_cg[:, A:2 * A],
                      boxes_cg[:, 2 * A:3 * A], boxes_cg[:, 3 * A:4 * A]], axis=-1)
    scores = 1.0 / (1.0 + np.exp(-raw[:, 4 * A:5 * A]))
    return boxes, scores


# ------------------------------------ main ----------------------------------------
if __name__ == "__main__":
    key = jax.random.PRNGKey(0)
    k_x, k_w, k_b = jax.random.split(key, 3)

    B, C, H, W = 2, 3, 16, 16
    ph, pw = PATCH_SIZE
    F = C * ph * pw                      # 192 flattened patch features
    O = 6 * NUM_ANCHORS                  # 4 box deltas + score + class per anchor

    x = jax.random.normal(k_x, (B, C, H, W), dtype=jnp.float32)
    w = jax.random.normal(k_w, (F, O), dtype=jnp.float32) * 0.05
    b = jax.random.normal(k_b, (1, O), dtype=jnp.float32) * 0.1

    preds = parallel_patch_detector_forward(x, w, b)
    assert len(preds) == B
    for p in preds:
        assert set(p.keys()) == {'boxes', 'scores', 'classes'}

    # sanity check against a pure-numpy reference (loose tolerance: bf16 matmul)
    dev_boxes, dev_scores, _, _ = map(np.asarray, _device_forward(x, w, b))
    ref_boxes, ref_scores = _reference_boxes_scores(
        np.asarray(x), np.asarray(w), np.asarray(b))
    np.testing.assert_allclose(dev_boxes, ref_boxes, atol=1e-1, rtol=0)
    np.testing.assert_allclose(dev_scores, ref_scores, atol=5e-2, rtol=0)

    print("KERNEL_OK")
</pallas_src>

<mosaic_0001>
module attributes {stable_mosaic.version = 11 : i64} {
  func.func @_detector_kernel(%arg0: i32, %arg1: memref<32x256xbf16, #tpu.memory_space<vmem>>, %arg2: memref<256x128xbf16, #tpu.memory_space<vmem>>, %arg3: memref<32x16xf32, #tpu.memory_space<vmem>>, %arg4: memref<32x128xf32, #tpu.memory_space<vmem>>) attributes {dimension_semantics = [#tpu.dimension_semantics<parallel>], iteration_bounds = array<i64: 1>, scalar_prefetch = 0 : i64, scratch_operands = 0 : i64, tpu.core_type = #tpu.core_type<tc>, window_params = [{transform_indices = @transform_0, window_bounds = array<i64: 32, 256>}, {pipeline_mode = #tpu.pipeline_mode<synchronous>, transform_indices = @transform_1, window_bounds = array<i64: 256, 128>}, {transform_indices = @transform_2, window_bounds = array<i64: 32, 16>}, {transform_indices = @transform_3, window_bounds = array<i64: 32, 128>}]} {
    %c0 = arith.constant 0 : index
    %c0_0 = arith.constant 0 : index
    %0 = vector.load %arg1[%c0, %c0_0] : memref<32x256xbf16, #tpu.memory_space<vmem>>, vector<32x256xbf16>
    %c0_1 = arith.constant 0 : index
    %c0_2 = arith.constant 0 : index
    %1 = vector.load %arg2[%c0_1, %c0_2] : memref<256x128xbf16, #tpu.memory_space<vmem>>, vector<256x128xbf16>
    %cst = arith.constant dense<0.000000e+00> : vector<32x128xf32>
    %2 = tpu.matmul %0, %1, %cst {dimension_numbers = #tpu.dot_dimension_numbers<[1], [0], [0], [1], [0, 0, 1, 1], [], []>} : vector<32x256xbf16>, vector<256x128xbf16>, vector<32x128xf32> -> vector<32x128xf32>
    %3 = vector.extract_strided_slice %2 {offsets = [0, 0], sizes = [32, 16], strides = [1, 1]} : vector<32x128xf32> to vector<32x16xf32>
    %4 = vector.extract_strided_slice %2 {offsets = [0, 16], sizes = [32, 4], strides = [1, 1]} : vector<32x128xf32> to vector<32x4xf32>
    %5 = vector.extract_strided_slice %2 {offsets = [0, 20], sizes = [32, 4], strides = [1, 1]} : vector<32x128xf32> to vector<32x4xf32>
    %6 = math.tanh %3 : vector<32x16xf32>
    %cst_3 = arith.constant 2.000000e+00 : f32
    %7 = vector.broadcast %cst_3 : f32 to vector<32x16xf32>
    %8 = arith.mulf %6, %7 : vector<32x16xf32>
    %c0_4 = arith.constant 0 : index
    %c0_5 = arith.constant 0 : index
    %9 = vector.load %arg3[%c0_4, %c0_5] : memref<32x16xf32, #tpu.memory_space<vmem>>, vector<32x16xf32>
    %10 = arith.addf %8, %9 : vector<32x16xf32>
    %11 = vector.extract_strided_slice %10 {offsets = [0, 0], sizes = [32, 4], strides = [1, 1]} : vector<32x16xf32> to vector<32x4xf32>
    %12 = vector.extract_strided_slice %10 {offsets = [0, 4], sizes = [32, 4], strides = [1, 1]} : vector<32x16xf32> to vector<32x4xf32>
    %13 = vector.extract_strided_slice %10 {offsets = [0, 8], sizes = [32, 4], strides = [1, 1]} : vector<32x16xf32> to vector<32x4xf32>
    %14 = vector.extract_strided_slice %10 {offsets = [0, 12], sizes = [32, 4], strides = [1, 1]} : vector<32x16xf32> to vector<32x4xf32>
    %15 = arith.subf %13, %11 : vector<32x4xf32>
    %16 = arith.subf %14, %12 : vector<32x4xf32>
    %17 = arith.mulf %15, %16 : vector<32x4xf32>
    %18 = arith.negf %4 : vector<32x4xf32>
    %19 = math.exp %18 : vector<32x4xf32>
    %cst_6 = arith.constant 1.000000e+00 : f32
    %20 = vector.broadcast %cst_6 : f32 to vector<32x4xf32>
    %21 = arith.addf %20, %19 : vector<32x4xf32>
    %22 = arith.divf %20, %21 : vector<32x4xf32>
    %cst_7 = arith.constant 0.000000e+00 : f32
    %23 = vector.broadcast %cst_7 : f32 to vector<32x4xf32>
    %24 = arith.cmpf ogt, %5, %23 : vector<32x4xf32>
    %25 = arith.extui %24 : vector<32x4xi1> to vector<32x4xi32>
    %26 = arith.sitofp %25 : vector<32x4xi32> to vector<32x4xf32>
    %27 = tpu.iota {dimensions = array<i32: 0>} : vector<32x4xi32>
    %c32_i32 = arith.constant 32 : i32
    %28 = arith.muli %arg0, %c32_i32 : i32
    %29 = vector.broadcast %28 : i32 to vector<32x4xi32>
    %30 = arith.addi %27, %29 : vector<32x4xi32>
    %c18_i32 = arith.constant 18 : i32
    %31 = vector.broadcast %c18_i32 : i32 to vector<32x4xi32>
    %32 = arith.cmpi slt, %30, %31 : vector<32x4xi32>
    %cst_8 = arith.constant 4.000000e+00 : f32
    %33 = vector.broadcast %cst_8 : f32 to vector<32x4xf32>
    %34 = arith.cmpf oge, %17, %33 : vector<32x4xf32>
    %cst_9 = arith.constant 3.000000e-01 : f32
    %35 = vector.broadcast %cst_9 : f32 to vector<32x4xf32>
    %36 = arith.cmpf oge, %22, %35 : vector<32x4xf32>
    %37 = arith.andi %34, %36 : vector<32x4xi1>
    %38 = arith.andi %37, %32 : vector<32x4xi1>
    %cst_10 = arith.constant 1.000000e+00 : f32
    %cst_11 = arith.constant 0.000000e+00 : f32
    %39 = vector.broadcast %cst_10 : f32 to vector<32x4xf32>
    %40 = vector.broadcast %cst_11 : f32 to vector<32x4xf32>
    %41 = arith.select %38, %39, %40 : vector<32x4xi1>, vector<32x4xf32>
    %cst_12 = arith.constant 0.000000e+00 : f32
    %42 = vector.broadcast %cst_12 : f32 to vector<32x100xf32>
    %43 = tpu.concatenate %10, %22, %26, %41, %42 in 1 : vector<32x16xf32>, vector<32x4xf32>, vector<32x4xf32>, vector<32x4xf32>, vector<32x100xf32> -> vector<32x128xf32>
    %c0_13 = arith.constant 0 : index
    %c0_14 = arith.constant 0 : index
    %44 = vector.load %arg4[%c0_13, %c0_14] : memref<32x128xf32, #tpu.memory_space<vmem>>, vector<32x128xf32>
    tpu.vector_store %arg4[%c0_13, %c0_14], %43 {strides = array<i32>} : memref<32x128xf32, #tpu.memory_space<vmem>>, vector<32x128xf32>,
    return
  }
  func.func @transform_0(%arg0: i32) -> (i32, i32) {
    %c0_i32 = arith.constant 0 : i32
    %c0_i32_0 = arith.constant 0 : i32
    return %arg0, %c0_i32 : i32, i32
  }
  func.func @transform_1(%arg0: i32) -> (i32, i32) {
    %c0_i32 = arith.constant 0 : i32
    %c0_i32_0 = arith.constant 0 : i32
    %c0_i32_1 = arith.constant 0 : i32
    return %c0_i32, %c0_i32_0 : i32, i32
  }
  func.func @transform_2(%arg0: i32) -> (i32, i32) {
    %c0_i32 = arith.constant 0 : i32
    %c0_i32_0 = arith.constant 0 : i32
    return %arg0, %c0_i32 : i32, i32
  }
  func.func @transform_3(%arg0: i32) -> (i32, i32) {
    %c0_i32 = arith.constant 0 : i32
    %c0_i32_0 = arith.constant 0 : i32
    return %arg0, %c0_i32 : i32, i32
  }
}

</mosaic_0001>

<llo_original>
// kernel: _device_forward.1
$region0: #{_device_forward.1}
  #allocation0 [shape = 'u32[]', space=smem, size = 0x4, offset = 0x4, fixed_abs, tag = 'smem constant byte address 0x4 - core index']
  #allocation1 [shape = 'u32[144,128]{1,0:T(1,128)}', space=vmem, size = 0x12000, scoped, tag = 'internal scratch']
  %s0 = inlined_call_operand.vmem [shape: bf16[32,256], index: 0, kind: input, shape index: {}]
  %s1 = inlined_call_operand.vmem [shape: bf16[256,128], index: 1, kind: input, shape index: {}]
  %s2 = inlined_call_operand.vmem [shape: f32[32,16], index: 2, kind: input, shape index: {}]
  %s3 = inlined_call_operand.vmem [shape: f32[32,128], index: 3, kind: output, shape index: {}]
  %s4 = sld [smem:[#allocation0]]
  $region22: #{_device_forward.1} parent=0
    _
  %s6 = ssub.s32 1, %s4
  %s7 = scalar_select 0, %s6, %s4
  // Predicated region
  $region2: #{_device_forward.1} parent=0 // pred_check
    _
  $region3: #{_device_forward.1} parent=0 // pred_check_branch
    %9 = sbr.rel (0) target = $region5
  $region4: #{_device_forward.1} parent=0 // pred_region
    _
  $region5: #{_device_forward.1} parent=0 // pred_fallthru
    _
  // Predicated region
  $region6: #{_device_forward.1} parent=0 // pred_check
    _
  $region7: #{_device_forward.1} parent=0 // pred_check_branch
    %11 = sbr.rel (0) target = $region9
  $region8: #{_device_forward.1} parent=0 // pred_region
    _
  $region9: #{_device_forward.1} parent=0 // pred_fallthru
    _
  // Predicated region
  $region10: #{_device_forward.1} parent=0 // pred_check
    _
  $region11: #{_device_forward.1} parent=0 // pred_check_branch
    %13 = sbr.rel (0) target = $region13
  $region12: #{_device_forward.1} parent=0 // pred_region
    _
  $region13: #{_device_forward.1} parent=0 // pred_fallthru
    _
  %v15 = vld [vmem:[%s0] sm:$0xff]
  %v16 = vld [vmem:[%s0 + $0x8] sm:$0xff]
  %v17 = vld [vmem:[%s0 + $0x10] sm:$0xff]
  %v18 = vld [vmem:[%s0 + $0x18] sm:$0xff]
  %v19 = vld [vmem:[%s1] sm:$0xf]
  %v20 = vld [vmem:[%s1 + $0x4] sm:$0xf]
  %v21 = vld [vmem:[%s1 + $0x8] sm:$0xf]
  %v22 = vld [vmem:[%s1 + $0xc] sm:$0xf]
  %v23 = vld [vmem:[%s1 + $0x10] sm:$0xf]
  %v24 = vld [vmem:[%s1 + $0x14] sm:$0xf]
  %v25 = vld [vmem:[%s1 + $0x18] sm:$0xf]
  %v26 = vld [vmem:[%s1 + $0x1c] sm:$0xf]
  %v27 = vld [vmem:[%s1 + $0x20] sm:$0xf]
  %v28 = vld [vmem:[%s1 + $0x24] sm:$0xf]
  %v29 = vld [vmem:[%s1 + $0x28] sm:$0xf]
  %v30 = vld [vmem:[%s1 + $0x2c] sm:$0xf]
  %v31 = vld [vmem:[%s1 + $0x30] sm:$0xf]
  %v32 = vld [vmem:[%s1 + $0x34] sm:$0xf]
  %v33 = vld [vmem:[%s1 + $0x38] sm:$0xf]
  %v34 = vld [vmem:[%s1 + $0x3c] sm:$0xf]
  %v35 = vld [vmem:[%s1 + $0x40] sm:$0xf]
  %v36 = vld [vmem:[%s1 + $0x44] sm:$0xf]
  %v37 = vld [vmem:[%s1 + $0x48] sm:$0xf]
  %v38 = vld [vmem:[%s1 + $0x4c] sm:$0xf]
  %v39 = vld [vmem:[%s1 + $0x50] sm:$0xf]
  %v40 = vld [vmem:[%s1 + $0x54] sm:$0xf]
  %v41 = vld [vmem:[%s1 + $0x58] sm:$0xf]
  %v42 = vld [vmem:[%s1 + $0x5c] sm:$0xf]
  %v43 = vld [vmem:[%s1 + $0x60] sm:$0xf]
  %v44 = vld [vmem:[%s1 + $0x64] sm:$0xf]
  %v45 = vld [vmem:[%s1 + $0x68] sm:$0xf]
  %v46 = vld [vmem:[%s1 + $0x6c] sm:$0xf]
  %v47 = vld [vmem:[%s1 + $0x70] sm:$0xf]
  %v48 = vld [vmem:[%s1 + $0x74] sm:$0xf]
  %v49 = vld [vmem:[%s1 + $0x78] sm:$0xf]
  %v50 = vld [vmem:[%s1 + $0x7c] sm:$0xf]
  %v55 = vunpack.c.l.b16 %v15
  %v56 = vunpack.c.h.b16 %v15
  %v57 = vunpack.c.l.b16 %v16
  %v58 = vunpack.c.h.b16 %v16
  %v59 = vunpack.c.l.b16 %v17
  %v60 = vunpack.c.h.b16 %v17
  %v61 = vunpack.c.l.b16 %v18
  %v62 = vunpack.c.h.b16 %v18
  %v63 = vpack.c.b16 %v57, %v55
  %v64 = vpack.c.b16 %v58, %v56
  %v65 = vpack.c.b16 %v61, %v59
  %v66 = vpack.c.b16 %v62, %v60
  %v103 = vunpack.c.l.b16 %v19
  %v104 = vunpack.c.l.b16 %v20
  %v105 = vunpack.c.l.b16 %v21
  %v106 = vunpack.c.l.b16 %v22
  %v107 = vunpack.c.l.b16 %v23
  %v108 = vunpack.c.l.b16 %v24
  %v109 = vunpack.c.l.b16 %v25
  %v110 = vunpack.c.l.b16 %v26
  %v111 = vunpack.c.l.b16 %v27
  %v112 = vunpack.c.l.b16 %v28
  %v113 = vunpack.c.l.b16 %v29
  %v114 = vunpack.c.l.b16 %v30
  %v115 = vunpack.c.l.b16 %v31
  %v116 = vunpack.c.l.b16 %v32
  %v117 = vunpack.c.l.b16 %v33
  %v118 = vunpack.c.l.b16 %v34
  %v119 = vunpack.c.l.b16 %v35
  %v120 = vunpack.c.l.b16 %v36
  %v121 = vunpack.c.l.b16 %v37
  %v122 = vunpack.c.l.b16 %v38
  %v123 = vunpack.c.l.b16 %v39
  %v124 = vunpack.c.l.b16 %v40
  %v125 = vunpack.c.l.b16 %v41
  %v126 = vunpack.c.l.b16 %v42
  %v127 = vunpack.c.l.b16 %v43
  %v128 = vunpack.c.l.b16 %v44
  %v129 = vunpack.c.l.b16 %v45
  %v130 = vunpack.c.l.b16 %v46
  %v131 = vunpack.c.l.b16 %v47
  %v132 = vunpack.c.l.b16 %v48
  %v133 = vunpack.c.l.b16 %v49
  %v134 = vunpack.c.l.b16 %v50
  %v135 = vpack.c.b16 %v104, %v103
  %v136 = vpack.c.b16 %v106, %v105
  %v137 = vpack.c.b16 %v108, %v107
  %v138 = vpack.c.b16 %v110, %v109
  %v139 = vpack.c.b16 %v112, %v111
  %v140 = vpack.c.b16 %v114, %v113
  %v141 = vpack.c.b16 %v116, %v115
  %v142 = vpack.c.b16 %v118, %v117
  %v143 = vpack.c.b16 %v120, %v119
  %v144 = vpack.c.b16 %v122, %v121
  %v145 = vpack.c.b16 %v124, %v123
  %v146 = vpack.c.b16 %v126, %v125
  %v147 = vpack.c.b16 %v128, %v127
  %v148 = vpack.c.b16 %v130, %v129
  %v149 = vpack.c.b16 %v132, %v131
  %v150 = vpack.c.b16 %v134, %v133
  %167 = vmatprep.subr.bf16.mxu0 0
  %168 = vmatpush1.bf16.msra.mxu0 %v135
  %169 = vmatprep.subr.bf16.mxu0 0
  %170 = vmatpush1.bf16.msra.mxu0 %v136
  %171 = vmatprep.subr.bf16.mxu0 0
  %172 = vmatpush1.bf16.msra.mxu0 %v137
  %173 = vmatprep.subr.bf16.mxu0 0
  %174 = vmatpush1.bf16.msra.mxu0 %v138
  %175 = vmatprep.subr.bf16.mxu0 0
  %176 = vmatpush1.bf16.msra.mxu0 %v139
  %177 = vmatprep.subr.bf16.mxu0 0
  %178 = vmatpush1.bf16.msra.mxu0 %v140
  %179 = vmatprep.subr.bf16.mxu0 0
  %180 = vmatpush1.bf16.msra.mxu0 %v141
  %181 = vmatprep.subr.bf16.mxu0 0
  %182 = vmatpush1.bf16.msra.mxu0 %v142
  %183 = vmatprep.subr.bf16.mxu0 0
  %184 = vmatpush1.bf16.msra.mxu0 %v143
  %185 = vmatprep.subr.bf16.mxu0 0
  %186 = vmatpush1.bf16.msra.mxu0 %v144
  %187 = vmatprep.subr.bf16.mxu0 0
  %188 = vmatpush1.bf16.msra.mxu0 %v145
  %189 = vmatprep.subr.bf16.mxu0 0
  %190 = vmatpush1.bf16.msra.mxu0 %v146
  %191 = vmatprep.subr.bf16.mxu0 0
  %192 = vmatpush1.bf16.msra.mxu0 %v147
  %193 = vmatprep.subr.bf16.mxu0 0
  %194 = vmatpush1.bf16.msra.mxu0 %v148
  %195 = vmatprep.subr.bf16.mxu0 0
  %196 = vmatpush1.bf16.msra.mxu0 %v149
  %197 = vmatprep.subr.bf16.mxu0 0
  %198 = vmatpush1.bf16.msra.mxu0 %v150
  %199 = vmatprep.mubr.bf16.mxu0 %v64
  %200 = vmatmul.mubr.bf16.gmra.mrb[0].mxu0 %v63
  %v201 = vpop.f32.mrb[0].mxu0
  %v202 = vadd.f32 0.0, %v201
  %v203 = vpop.f32.mrb[0].mxu0
  %v204 = vpop.f32.mrb[0].mxu0
  %v205 = vadd.f32 0.0, %v204
  %v206 = vpop.f32.mrb[0].mxu0
  %207 = vmatprep.mubr.bf16.mxu0 %v66
  %208 = vmatmul.mubr.bf16.gmra.mrb[0].mxu0 %v65
  %v209 = vpop.f32.mrb[0].mxu0
  %v210 = vadd.f32 0.0, %v209
  %v211 = vpop.f32.mrb[0].mxu0
  %v212 = vpop.f32.mrb[0].mxu0
  %v213 = vadd.f32 0.0, %v212
  %v214 = vpop.f32.mrb[0].mxu0
  %215 = vdwg.mxu0
  %v216 = vtanh.pop %v202
  %v217 = vtanh.pop %v205
  %v218 = vtanh.pop %v210
  %v219 = vtanh.pop %v213
  %v220 = vmul.f32 %v216, 2.0
  %v221 = vmul.f32 %v217, 2.0
  %v222 = vmul.f32 %v218, 2.0
  %v223 = vmul.f32 %v219, 2.0
  %v224 = vld [vmem:[%s2] sm:$0xff]
  %v225 = vld [vmem:[%s2 + $0x8] sm:$0xff]
  %v226 = vld [vmem:[%s2 + $0x10] sm:$0xff]
  %v227 = vld [vmem:[%s2 + $0x18] sm:$0xff]
  %v228 = vadd.f32 %v220, %v224
  %v229 = vadd.f32 %v221, %v225
  %v230 = vadd.f32 %v222, %v226
  %v231 = vadd.f32 %v223, %v227
  %236 = vrot.lane.b32.xlu0 %v228, 8
  %v237 = vpop.permute.xlu0 %236
  %238 = vrot.lane.b32.xlu0 %v229, 8
  %v239 = vpop.permute.xlu0 %238
  %240 = vrot.lane.b32.xlu0 %v230, 8
  %v241 = vpop.permute.xlu0 %240
  %242 = vrot.lane.b32.xlu0 %v231, 8
  %v243 = vpop.permute.xlu0 %242
  %v248 = vsub.f32 %v228, %v237
  %v249 = vsub.f32 %v229, %v239
  %v250 = vsub.f32 %v230, %v241
  %v251 = vsub.f32 %v231, %v243
  %256 = vrot.lane.b32.xlu0 %v248, 124
  %v257 = vpop.permute.xlu0 %256
  %258 = vrot.lane.b32.xlu0 %v249, 124
  %v259 = vpop.permute.xlu0 %258
  %260 = vrot.lane.b32.xlu0 %v250, 124
  %v261 = vpop.permute.xlu0 %260
  %262 = vrot.lane.b32.xlu0 %v251, 124
  %v263 = vpop.permute.xlu0 %262
  %v268 = vmul.f32 %v248, %v257
  %v269 = vmul.f32 %v249, %v259
  %v270 = vmul.f32 %v250, %v261
  %v271 = vmul.f32 %v251, %v263
  %v272 = vxor.u32 %v202, 2147483648
  %v273 = vxor.u32 %v205, 2147483648
  %v274 = vxor.u32 %v210, 2147483648
  %v275 = vxor.u32 %v213, 2147483648
  %v276 = vmul.f32 %v272, 1.442695
  %v277 = vpow.pop %v276
  %v278 = vmul.f32 %v273, 1.442695
  %v279 = vpow.pop %v278
  %v280 = vmul.f32 %v274, 1.442695
  %v281 = vpow.pop %v280
  %v282 = vmul.f32 %v275, 1.442695
  %v283 = vpow.pop %v282
  %v284 = vadd.f32 %v277, 1.0
  %v285 = vadd.f32 %v279, 1.0
  %v286 = vadd.f32 %v281, 1.0
  %v287 = vadd.f32 %v283, 1.0
  %v288 = vrcp.pop %v284
  %v289 = vmul.f32 1.0, %v288
  %v290 = vrcp.pop %v285
  %v291 = vmul.f32 1.0, %v290
  %v292 = vrcp.pop %v286
  %v293 = vmul.f32 1.0, %v292
  %v294 = vrcp.pop %v287
  %v295 = vmul.f32 1.0, %v294
  %vm296 = vcmp.gt.f32.partialorder %v202, 0.0
  %vm297 = vcmp.gt.f32.partialorder %v205, 0.0
  %vm298 = vcmp.gt.f32.partialorder %v210, 0.0
  %vm299 = vcmp.gt.f32.partialorder %v213, 0.0
  %v300 = vsel %vm296, 1, 0
  %v301 = vsel %vm297, 1, 0
  %v302 = vsel %vm298, 1, 0
  %v303 = vsel %vm299, 1, 0
  %v304 = vcvt.s32.f32 %v300
  %v305 = vcvt.s32.f32 %v301
  %v306 = vcvt.s32.f32 %v302
  %v307 = vcvt.s32.f32 %v303
  %v308 = vlaneseq
  %v309 = vshrl.u32 %v308, 7
  %v310 = vadd.s32 %v309, 8
  %v311 = vadd.s32 %v309, 16
  %v312 = vadd.s32 %v309, 24
  %s313 = smul.u32 0, 32
  %v314 = vstv %s313
  %v315 = vadd.s32 %v309, %v314
  %v316 = vadd.s32 %v310, %v314
  %v317 = vadd.s32 %v311, %v314
  %v318 = vadd.s32 %v312, %v314
  %vm319 = vcmp.lt.s32.totalorder %v315, 18
  %vm320 = vcmp.lt.s32.totalorder %v316, 18
  %vm321 = vcmp.lt.s32.totalorder %v317, 18
  %vm322 = vcmp.lt.s32.totalorder %v318, 18
  %vm323 = vcmp.ge.f32.partialorder %v268, 4.0
  %vm324 = vcmp.ge.f32.partialorder %v269, 4.0
  %vm325 = vcmp.ge.f32.partialorder %v270, 4.0
  %vm326 = vcmp.ge.f32.partialorder %v271, 4.0
  %vm327 = vcmp.ge.f32.partialorder %v289, 0.3
  %vm328 = vcmp.ge.f32.partialorder %v291, 0.3
  %vm329 = vcmp.ge.f32.partialorder %v293, 0.3
  %vm330 = vcmp.ge.f32.partialorder %v295, 0.3
  %v331 = vsel %vm327, 1, 0
  %v332 = vsel %vm328, 1, 0
  %v333 = vsel %vm329, 1, 0
  %v334 = vsel %vm330, 1, 0
  %335 = vrot.lane.b32.xlu0 %v331, 120
  %v336 = vpop.permute.xlu0 %335
  %337 = vrot.lane.b32.xlu0 %v332, 120
  %v338 = vpop.permute.xlu0 %337
  %339 = vrot.lane.b32.xlu0 %v333, 120
  %v340 = vpop.permute.xlu0 %339
  %341 = vrot.lane.b32.xlu0 %v334, 120
  %v342 = vpop.permute.xlu0 %341
  %vm343 = vcmp.ne.s32.totalorder %v336, 0
  %vm344 = vcmp.ne.s32.totalorder %v338, 0
  %vm345 = vcmp.ne.s32.totalorder %v340, 0
  %vm346 = vcmp.ne.s32.totalorder %v342, 0
  %vm347 = vmand %vm323, %vm343
  %vm348 = vmand %vm324, %vm344
  %vm349 = vmand %vm325, %vm345
  %vm350 = vmand %vm326, %vm346
  %vm351 = vmand %vm347, %vm319
  %vm352 = vmand %vm348, %vm320
  %vm353 = vmand %vm349, %vm321
  %vm354 = vmand %vm350, %vm322
  %v355 = vsel %vm351, 1.0, 0.0
  %v356 = vsel %vm352, 1.0, 0.0
  %v357 = vsel %vm353, 1.0, 0.0
  %v358 = vsel %vm354, 1.0, 0.0
  %363 = vrot.lane.b32.xlu0 %v355, 16
  %v364 = vpop.permute.xlu0 %363
  %365 = vrot.lane.b32.xlu0 %v356, 16
  %v366 = vpop.permute.xlu0 %365
  %367 = vrot.lane.b32.xlu0 %v357, 16
  %v368 = vpop.permute.xlu0 %367
  %369 = vrot.lane.b32.xlu0 %v358, 16
  %v370 = vpop.permute.xlu0 %369
  %vm375 = vcmask 130048
  %v376 = vsel %vm375, %v228, %v289
  %v377 = vsel %vm375, %v229, %v291
  %v378 = vsel %vm375, %v230, %v293
  %v379 = vsel %vm375, %v231, %v295
  %vm380 = vcmask 162816
  %v381 = vsel %vm380, %v376, %v304
  %v382 = vsel %vm380, %v377, %v305
  %v383 = vsel %vm380, %v378, %v306
  %v384 = vsel %vm380, %v379, %v307
  %vm385 = vcmask 195584
  %v386 = vsel %vm385, %v381, %v364
  %v387 = vsel %vm385, %v382, %v366
  %v388 = vsel %vm385, %v383, %v368
  %v389 = vsel %vm385, %v384, %v370
  %vm390 = vcmask 228352
  %v391 = vsel %vm390, %v386, 0.0
  %v392 = vsel %vm390, %v387, 0.0
  %v393 = vsel %vm390, %v388, 0.0
  %v394 = vsel %vm390, %v389, 0.0
  %395 = vst [vmem:[%s3] sm:$0xff] %v391
  %396 = vst [vmem:[%s3 + $0x8] sm:$0xff] %v392
  %397 = vst [vmem:[%s3 + $0x10] sm:$0xff] %v393
  %398 = vst [vmem:[%s3 + $0x18] sm:$0xff] %v394
  // Predicated region
  $region14: #{_device_forward.1} parent=0 // pred_check
    _
  $region15: #{_device_forward.1} parent=0 // pred_check_branch
    %400 = sbr.rel (0) target = $region17
  $region16: #{_device_forward.1} parent=0 // pred_region
    _
  $region17: #{_device_forward.1} parent=0 // pred_fallthru
    _
  // Predicated region
  $region18: #{_device_forward.1} parent=0 // pred_check
    _
  $region19: #{_device_forward.1} parent=0 // pred_check_branch
    %402 = sbr.rel (0) target = $region21
  $region20: #{_device_forward.1} parent=0 // pred_region
    _
  $region21: #{_device_forward.1} parent=0 // pred_fallthru
    _

</llo_original>
